<compile_context>
chip_gen: v5e
topology: v5e:2x2
jax: 0.10.0
libtpu: 0.0.40
codegen_flags: <defaults>
</compile_context>

<pallas_src>
import math
import functools

import jax
import jax.numpy as jnp
from jax.experimental import pallas as pl
from jax.experimental.pallas import tpu as pltpu


def _make_pe_table(d_model: int, max_len: int) -> jnp.ndarray:
    """Deterministic sinusoidal table, identical to the PyTorch buffer (max_len, d_model)."""
    position = jnp.arange(max_len, dtype=jnp.float32)[:, None]              # (max_len, 1)
    div_term = jnp.exp(
        jnp.arange(0, d_model, 2, dtype=jnp.float32) * -(math.log(10000.0) / d_model)
    )                                                                        # (d_model/2,)
    pe = jnp.zeros((max_len, d_model), dtype=jnp.float32)
    pe = pe.at[:, 0::2].set(jnp.sin(position * div_term))
    pe = pe.at[:, 1::2].set(jnp.cos(position * div_term))
    return pe


def _pe_dropout_kernel(x_ref, pe_ref, seed_ref, o_ref, *,
                       p: float, train: bool, use_hw_prng: bool):
    # x_ref / o_ref: (tS, D2) VMEM tile (batch dim squeezed); pe_ref: (tS, D2); seed_ref: (1,) SMEM.
    y = x_ref[...] + pe_ref[...]                       # shapes match exactly, no broadcast

    if train and p > 0.0:
        threshold = jnp.uint32(min(int(round(p * 2.0 ** 32)), 0xFFFFFFFF))
        if use_hw_prng:
            # Hardware PRNG: seed once per (s-tile, batch) tile, draw one uint32 per element.
            pltpu.prng_seed(seed_ref[0], pl.program_id(0), pl.program_id(1))
            bits = pltpu.prng_random_bits(y.shape)
            if bits.dtype != jnp.uint32:
                bits = pltpu.bitcast(bits, jnp.uint32)
            keep = bits >= threshold
        else:
            # Cheap stateless counter-hash fallback (non-TPU / interpret backends only).
            s = pl.program_id(0).astype(jnp.uint32)
            b = pl.program_id(1).astype(jnp.uint32)
            rows = jax.lax.broadcasted_iota(jnp.int32, y.shape, 0).astype(jnp.uint32)
            cols = jax.lax.broadcasted_iota(jnp.int32, y.shape, 1).astype(jnp.uint32)
            h = ((rows << 16) ^ cols
                 ^ (s * jnp.uint32(0x9E3779B9))
                 ^ (b * jnp.uint32(0x85EBCA6B))
                 ^ (seed_ref[0].astype(jnp.uint32) * jnp.uint32(0xC2B2AE35)))
            h = h ^ (h >> 15)
            h = h * jnp.uint32(0x7FEB352D)
            h = h ^ (h >> 16)
            h = h * jnp.uint32(0x846CA68B)
            h = h ^ (h >> 16)
            keep = h >= threshold
        y = jnp.where(keep, y * jnp.float32(1.0 / (1.0 - p)), jnp.float32(0.0))

    o_ref[...] = y.astype(o_ref.dtype)


def positional_encoding_forward(x, pe_table, *, p: float = 0.1,
                                train: bool = False, seed: int = 0,
                                donate_x: bool = False):
    """x: (B, S, D). pe_table: (max_len, D). Returns dropout(x + pe[:S])."""
    B, S, D = x.shape
    max_len, d_model = pe_table.shape
    if d_model != D:
        raise ValueError(f"d_model mismatch: {d_model} vs {D}")
    if S > max_len:
        raise ValueError(f"sequence length {S} exceeds max_len {max_len}")
    pe_s = pe_table[:S, :].astype(x.dtype)             # (S, D) slice, plain JAX glue

    itemsize = jnp.dtype(x.dtype).itemsize
    sub = {4: 8, 2: 16, 1: 32}.get(itemsize, 8)        # dtype-aware native sublane tile

    # Lane-dense folding: view (S, D) as (S2, D2) with D2 a multiple of 128
    # (row-major view, element correspondence with pe preserved).  If S is not a
    # multiple of the fold factor, pad the sequence axis (sliced off at the end)
    # so stores are always full-lane instead of masked vst.msk partials.
    r = 128 // math.gcd(D, 128)
    S_pad = S
    if r > 1:
        if S % r != 0:
            S_pad = ((S + r - 1) // r) * r
            x = jnp.pad(x, ((0, 0), (0, S_pad - S), (0, 0)))
            pe_s = jnp.pad(pe_s, ((0, S_pad - S), (0, 0)))
        S2, D2 = S_pad // r, D * r
    else:
        S2, D2 = S_pad, D
    x2 = x.reshape(B, S2, D2)
    pe2 = pe_s.reshape(S2, D2)

    # Tile the (folded) sequence axis to ~4 MiB blocks, sublane-aligned, preferring a
    # tile that divides S2 so the last grid step is not a ragged partial block.
    target_bytes = 4 << 20
    tS = min(S2, max(sub, target_bytes // (D2 * itemsize)))
    if tS < S2:
        tS = max(sub, (tS // sub) * sub)
        if S2 % tS != 0:
            for cand in range(tS, max(sub, tS // 2) - 1, -sub):
                if S2 % cand == 0:
                    tS = cand
                    break
        tS = min(tS, S2)
    nS = pl.cdiv(S2, tS)

    seed_arr = jnp.array([seed], dtype=jnp.int32)
    use_hw_prng = (jax.default_backend() == "tpu")

    kernel = functools.partial(
        _pe_dropout_kernel,
        p=float(p), train=bool(train), use_hw_prng=use_hw_prng,
    )

    out2 = pl.pallas_call(
        kernel,
        out_shape=jax.ShapeDtypeStruct((B, S2, D2), x.dtype),
        grid=(nS, B),                                   # B innermost -> pe tile stays resident
        in_specs=[
            pl.BlockSpec((None, tS, D2), lambda s, b: (b, s, 0)),   # x tile (batch squeezed)
            pl.BlockSpec((tS, D2), lambda s, b: (s, 0)),            # pe tile, b-independent
            pl.BlockSpec(memory_space=pltpu.MemorySpace.SMEM),      # seed scalar
        ],
        out_specs=pl.BlockSpec((None, tS, D2), lambda s, b: (b, s, 0)),
        compiler_params=pltpu.CompilerParams(
            # s-tile axis parallel (v7x megacore shards here), B sequential/innermost.
            dimension_semantics=("parallel", "arbitrary"),
            vmem_limit_bytes=48 << 20,
        ),
        input_output_aliases=({0: 0} if donate_x else {}),
    )(x2, pe2, seed_arr)

    out = out2.reshape(B, S_pad, D)
    if S_pad != S:
        out = out[:, :S, :]
    return out


if __name__ == "__main__":
    # Small shapes consistent with the module: batch=2, seq=8, d_model=32, max_len=64.
    B, S, D, MAX_LEN = 2, 8, 32, 64
    DROPOUT_P = 0.1

    key = jax.random.PRNGKey(0)
    x = jax.random.normal(key, (B, S, D), dtype=jnp.float32)

    pe_table = _make_pe_table(D, MAX_LEN)
    ref = x + pe_table[None, :S, :]

    # Eval mode (dropout = identity): exact match against pure-JAX reference.
    out_eval = positional_encoding_forward(x, pe_table, p=DROPOUT_P, train=False)
    out_eval = jax.block_until_ready(out_eval)
    assert out_eval.shape == (B, S, D)
    assert jnp.allclose(out_eval, ref, atol=1e-6), "eval-mode mismatch vs reference"

    # Train mode: every output element must be either 0 (dropped) or ref / (1 - p) (kept).
    out_train = positional_encoding_forward(x, pe_table, p=DROPOUT_P, train=True, seed=123)
    out_train = jax.block_until_ready(out_train)
    assert out_train.shape == (B, S, D)
    scaled_ref = ref / (1.0 - DROPOUT_P)
    diff = jnp.where(out_train == 0.0, 0.0, out_train - scaled_ref)
    assert jnp.max(jnp.abs(diff)) < 1e-5, "train-mode values are not {0, ref/(1-p)}"
    drop_frac = float(jnp.mean((out_train == 0.0).astype(jnp.float32)))
    assert 0.0 < drop_frac < 0.5, f"dropout fraction {drop_frac} implausible for p={DROPOUT_P}"

    print("KERNEL_OK")
</pallas_src>

<mosaic_0001>
module attributes {stable_mosaic.version = 11 : i64} {
  func.func @_pe_dropout_kernel(%arg0: i32, %arg1: i32, %arg2: memref<1x2x128xf32, #tpu.memory_space<vmem>>, %arg3: memref<2x128xf32, #tpu.memory_space<vmem>>, %arg4: memref<1xi32, #tpu.memory_space<smem>>, %arg5: memref<1x2x128xf32, #tpu.memory_space<vmem>>) attributes {dimension_semantics = [#tpu.dimension_semantics<parallel>, #tpu.dimension_semantics<arbitrary>], iteration_bounds = array<i64: 1, 2>, scalar_prefetch = 0 : i64, scratch_operands = 0 : i64, tpu.core_type = #tpu.core_type<tc>, window_params = [{transform_indices = @transform_0, window_bounds = array<i64: 1, 2, 128>}, {transform_indices = @transform_1, window_bounds = array<i64: 2, 128>}, {transform_indices = @transform_2, window_bounds = array<i64: 1>}, {transform_indices = @transform_3, window_bounds = array<i64: 1, 2, 128>}]} {
    %c0 = arith.constant 0 : index
    %c0_0 = arith.constant 0 : index
    %c0_1 = arith.constant 0 : index
    %0 = vector.load %arg2[%c0, %c0_0, %c0_1] : memref<1x2x128xf32, #tpu.memory_space<vmem>>, vector<1x2x128xf32>
    %1 = vector.shape_cast %0 : vector<1x2x128xf32> to vector<2x128xf32>
    %c0_2 = arith.constant 0 : index
    %c0_3 = arith.constant 0 : index
    %2 = vector.load %arg3[%c0_2, %c0_3] : memref<2x128xf32, #tpu.memory_space<vmem>>, vector<2x128xf32>
    %3 = arith.addf %1, %2 : vector<2x128xf32>
    %c0_4 = arith.constant 0 : index
    %c0_5 = arith.constant 0 : index
    %c0_6 = arith.constant 0 : index
    %4 = vector.load %arg5[%c0_4, %c0_5, %c0_6] : memref<1x2x128xf32, #tpu.memory_space<vmem>>, vector<1x2x128xf32>
    %5 = vector.shape_cast %4 : vector<1x2x128xf32> to vector<2x128xf32>
    %6 = vector.shape_cast %3 : vector<2x128xf32> to vector<1x2x128xf32>
    tpu.vector_store %arg5[%c0_4, %c0_5, %c0_6], %6 {strides = array<i32>} : memref<1x2x128xf32, #tpu.memory_space<vmem>>, vector<1x2x128xf32>,
    return
  }
  func.func @transform_0(%arg0: i32, %arg1: i32) -> (i32, i32, i32) {
    %c0_i32 = arith.constant 0 : i32
    %c0_i32_0 = arith.constant 0 : i32
    return %arg1, %arg0, %c0_i32 : i32, i32, i32
  }
  func.func @transform_1(%arg0: i32, %arg1: i32) -> (i32, i32) {
    %c0_i32 = arith.constant 0 : i32
    %c0_i32_0 = arith.constant 0 : i32
    return %arg0, %c0_i32 : i32, i32
  }
  func.func @transform_2(%arg0: i32, %arg1: i32) -> i32 {
    %c0_i32 = arith.constant 0 : i32
    %c0_i32_0 = arith.constant 0 : i32
    return %c0_i32 : i32
  }
  func.func @transform_3(%arg0: i32, %arg1: i32) -> (i32, i32, i32) {
    %c0_i32 = arith.constant 0 : i32
    %c0_i32_0 = arith.constant 0 : i32
    return %arg1, %arg0, %c0_i32 : i32, i32, i32
  }
}

</mosaic_0001>

<llo_original>
// kernel: tpu_custom_call.1
$region0: #{tpu_custom_call.1}
  #allocation0 [shape = 'u32[]', space=smem, size = 0x4, offset = 0x4, fixed_abs, tag = 'smem constant byte address 0x4 - core index']
  #allocation1 [shape = 'u32[72,128]{1,0:T(1,128)}', space=vmem, size = 0x9000, scoped, tag = 'internal scratch']
  #allocation2 [shape = 's32[1]{0:T(128)S(6)}', space=smem, size = 0x200, scoped, tag = 'scoped memory for tpu_custom_call.1']
  %s0 = inlined_call_operand.hbm [shape: f32[2,2,128], index: 0, kind: input, shape index: {}]
  %s1 = inlined_call_operand.vmem [shape: f32[2,128], index: 1, kind: input, shape index: {}]
  %s2 = inlined_call_operand.<no memory space> [shape: s32[1], index: 2, kind: input, shape index: {}]
  %s3 = inlined_call_operand.hbm [shape: f32[2,2,128], index: 3, kind: output, shape index: {}]
  %s4 = sld [smem:[#allocation0]]
  $region49: #{tpu_custom_call.1} parent=0
    _
  %s6 = ssub.s32 1, %s4
  %s7 = scalar_select 0, %s6, %s4
  %8 = sst [smem:[#allocation2]] %s2
  $region1: #{tpu_custom_call.1} parent=0
    #allocation3 [shape = 'u8[2048]{0}', space=vmem, size = 0x800, scoped, tag = 'input window, operand 0']
    #allocation4 [shape = 's32[2]{0}', space=sflag, size = 0x8, scoped, tag = 'scoped memory for tpu_custom_call.1']
    #allocation5 [shape = 's32[2]{0}', space=sflag, size = 0x8, scoped, tag = 'scoped memory for tpu_custom_call.1']
    #allocation6 [shape = 'u8[2048]{0}', space=vmem, size = 0x800, scoped, tag = 'output window, operand 0']
    %9 = vsyncpa [#allocation4], 0
    %s10 = scalar_lea.sflag [#allocation4], 1
    %11 = vsyncpa %s10, 0
    %12 = vsyncpa [#allocation5], 0
    %s13 = scalar_lea.sflag [#allocation5], 1
    %14 = vsyncpa %s13, 0
    loop: start=0, step=1, limit=4
    $region2: #{tpu_custom_call.1} parent=1 // loop_pre_header
      _
    $region3: #{tpu_custom_call.1} parent=1 // loop_header
      %s16 = sphi 0, %s20
      %p17 = scmp.ge.s32.totalorder %s16, 4
      %s23 = sphi 0, %s35
      %s24 = sphi 0, %s31
      %s25 = sphi 0, %s23
      %s26 = sphi 0, %s24
      %s27 = sphi 0, %s25
      %s28 = sphi 0, %s26
      %s40 = sphi 0, %s42
      %s43 = sphi 0, %s40
      %s44 = sphi 0, %s43
      %s60 = sphi 0, %s44
      %s66 = sphi 0, %s68
      %s69 = sphi 0, %s66
      %s70 = sphi 0, %s69
      %s86 = sphi 0, %s70
      %s90 = sphi 0, %s90
      %s92 = sphi 0, %s90
      %s93 = sphi 0, %s92
      %s107 = sphi 0, %s93
      %s115 = sphi 0, %s117
      %s118 = sphi 0, %s115
      %s119 = sphi 0, %s118
      %s135 = sphi 0, %s119
    $region4: #{tpu_custom_call.1} parent=1 // loop_header_branch
      %19 = sbr.rel (%p17) target = $region8
    $region5: #{tpu_custom_call.1} parent=1 // loop_body
      %s21 = ssub.s32 %s16, 1
      %s22 = ssub.s32 %s16, 2
      %s29 = sadd.s32 1, %s24
      %p30 = scmp.ge.s32.totalorder %s29, 2
      %s31 = scalar_select %p30, 0, %s29
      %s32 = sadd.s32 1, %s23
      %s33 = scalar_select %p30, %s32, %s23
      %p34 = scmp.ge.s32.totalorder %s33, 1
      %s35 = scalar_select %p34, 0, %s33
      %s36 = ssub.s32 %s24, %s31
      %s37 = ssub.s32 %s23, %s35
      %s38 = sor.u32 %s36, %s37
      %p39 = scmp.eq.s32.totalorder %s38, 0
      %s41 = sadd.s32 %s40, 1
      %s42 = scalar_select %p39, %s40, %s41
      %p45 = pneg %p39
      %p46 = scmp.eq.s32.totalorder %s16, 1
      %p47 = por %p45, %p46
      %p48 = scmp.ne.s32.totalorder %s40, %s43
      %p49 = scmp.eq.s32.totalorder %s16, 0
      %p50 = por %p48, %p49
      %p51 = scmp.ne.s32.totalorder %s40, %s43
      %p52 = scmp.eq.s32.totalorder %s21, 1
      %p53 = por %p51, %p52
      %p54 = scmp.ne.s32.totalorder %s43, %s44
      %p55 = scmp.eq.s32.totalorder %s21, 0
      %p56 = por %p54, %p55
      %p57 = scmp.ne.s32.totalorder %s43, %s44
      %p58 = scmp.eq.s32.totalorder %s22, 1
      %p59 = por %p57, %p58
      %p61 = scmp.ne.s32.totalorder %s44, %s60
      %p62 = scmp.eq.s32.totalorder %s22, 0
      %p63 = por %p61, %p62
      %s64 = ssub.s32 %s23, %s35
      %p65 = scmp.eq.s32.totalorder %s64, 0
      %s67 = sadd.s32 %s66, 1
      %s68 = scalar_select %p65, %s66, %s67
      %p71 = pneg %p65
      %p72 = scmp.eq.s32.totalorder %s16, 1
      %p73 = por %p71, %p72
      %p74 = scmp.ne.s32.totalorder %s66, %s69
      %p75 = scmp.eq.s32.totalorder %s16, 0
      %p76 = por %p74, %p75
      %p77 = scmp.ne.s32.totalorder %s66, %s69
      %p78 = scmp.eq.s32.totalorder %s21, 1
      %p79 = por %p77, %p78
      %p80 = scmp.ne.s32.totalorder %s69, %s70
      %p81 = scmp.eq.s32.totalorder %s21, 0
      %p82 = por %p80, %p81
      %p83 = scmp.ne.s32.totalorder %s69, %s70
      %p84 = scmp.eq.s32.totalorder %s22, 1
      %p85 = por %p83, %p84
      %p87 = scmp.ne.s32.totalorder %s70, %s86
      %p88 = scmp.eq.s32.totalorder %s22, 0
      %p89 = por %p87, %p88
      %s91 = sadd.s32 %s90, 1
      %p94 = scmp.eq.s32.totalorder %s16, 1
      %p95 = scmp.ne.s32.totalorder %s90, %s92
      %p96 = scmp.eq.s32.totalorder %s16, 0
      %p97 = por %p95, %p96
      %p98 = scmp.ne.s32.totalorder %s90, %s92
      %p99 = scmp.eq.s32.totalorder %s21, 1
      %p100 = por %p98, %p99
      %p101 = scmp.ne.s32.totalorder %s92, %s93
      %p102 = scmp.eq.s32.totalorder %s21, 0
      %p103 = por %p101, %p102
      %p104 = scmp.ne.s32.totalorder %s92, %s93
      %p105 = scmp.eq.s32.totalorder %s22, 1
      %p106 = por %p104, %p105
      %p108 = scmp.ne.s32.totalorder %s93, %s107
      %p109 = scmp.eq.s32.totalorder %s22, 0
      %p110 = por %p108, %p109
      %s111 = ssub.s32 %s24, %s31
      %s112 = ssub.s32 %s23, %s35
      %s113 = sor.u32 %s111, %s112
      %p114 = scmp.eq.s32.totalorder %s113, 0
      %s116 = sadd.s32 %s115, 1
      %s117 = scalar_select %p114, %s115, %s116
      %p120 = pneg %p114
      %p121 = scmp.eq.s32.totalorder %s16, 1
      %p122 = por %p120, %p121
      %p123 = scmp.ne.s32.totalorder %s115, %s118
      %p124 = scmp.eq.s32.totalorder %s16, 0
      %p125 = por %p123, %p124
      %p126 = scmp.ne.s32.totalorder %s115, %s118
      %p127 = scmp.eq.s32.totalorder %s21, 1
      %p128 = por %p126, %p127
      %p129 = scmp.ne.s32.totalorder %s118, %s119
      %p130 = scmp.eq.s32.totalorder %s21, 0
      %p131 = por %p129, %p130
      %p132 = scmp.ne.s32.totalorder %s118, %s119
      %p133 = scmp.eq.s32.totalorder %s22, 1
      %p134 = por %p132, %p133
      %p136 = scmp.ne.s32.totalorder %s119, %s135
      %p137 = scmp.eq.s32.totalorder %s22, 0
      %p138 = por %p136, %p137
      %p139 = scmp.le.s32.totalorder 1, %s16
      %p140 = scmp.lt.s32.totalorder %s16, 3
      %p141 = pnand %p139, %p140
      %p142 = pneg %p141
      // Predicated region
      $region9: #{tpu_custom_call.1} parent=5 // pred_check
        _
      $region10: #{tpu_custom_call.1} parent=5 // pred_check_branch
        %144 = sbr.rel (%p141) target = $region12
      $region11: #{tpu_custom_call.1} parent=5 // pred_region
        %s145 = ssub.s32 %s16, 1
        // Predicated region
        $region13: #{tpu_custom_call.1} parent=11 // pred_check
          %p146 = pneg %p82
        $region14: #{tpu_custom_call.1} parent=11 // pred_check_branch
          %148 = sbr.rel (%p146) target = $region16
        $region15: #{tpu_custom_call.1} parent=11 // pred_region
          %p149 = scmp.lt.s32.totalorder %s25, 0
          %s150 = scalar_select %p149, %s25, 0
          %s151 = smul.addr %s150, 2
          %s152 = scalar_lea.vmem %s1, %s151
        $region16: #{tpu_custom_call.1} parent=11 // pred_fallthru
          _
        // Predicated region
        $region17: #{tpu_custom_call.1} parent=11 // pred_check
          %p153 = pneg %p103
        $region18: #{tpu_custom_call.1} parent=11 // pred_check_branch
          %155 = sbr.rel (%p153) target = $region20
        $region19: #{tpu_custom_call.1} parent=11 // pred_region
          _
        $region20: #{tpu_custom_call.1} parent=11 // pred_fallthru
          _
      $region12: #{tpu_custom_call.1} parent=5 // pred_fallthru
        _
      %p156 = scmp.lt.s32.totalorder %s16, 2
      // Predicated region
      $region21: #{tpu_custom_call.1} parent=5 // pred_check
        %p157 = pneg %p156
      $region22: #{tpu_custom_call.1} parent=5 // pred_check_branch
        %159 = sbr.rel (%p157) target = $region24
      $region23: #{tpu_custom_call.1} parent=5 // pred_region
        // Predicated region
        $region25: #{tpu_custom_call.1} parent=23 // pred_check
          %p160 = pneg %p50
        $region26: #{tpu_custom_call.1} parent=23 // pred_check_branch
          %162 = sbr.rel (%p160) target = $region28
        $region27: #{tpu_custom_call.1} parent=23 // pred_region
          %s163 = sand.u32 %s40, 1
          %s164 = scalar_lea.sflag [#allocation4], %s163
          %s165 = sand.u32 %s40, 1
          %s166 = smul.addr %s165, 2
          %s167 = scalar_lea.vmem [#allocation3], %s166
          %169 = vsyncadd %s164, 0
          %s170 = sadd.s32 %s23, %s24
          %s171 = smul.addr %s170, 2
          %s172 = scalar_lea.hbm %s0, %s171
          %s174 = sshll.u32 %s172, 4
          %s175 = int_to_ptr.hbm [resolvable:$true] %s174
          %s176 = sshll.u32 %s167, 4
          %s177 = int_to_ptr.vmem [resolvable:$true] %s176
          %179 = dma.hbm_to_vmem [thread:$0]  %s175, 32, %s177, %s164
        $region28: #{tpu_custom_call.1} parent=23 // pred_fallthru
          _
      $region24: #{tpu_custom_call.1} parent=5 // pred_fallthru
        _
      %p180 = scmp.le.s32.totalorder 1, %s16
      %p181 = scmp.lt.s32.totalorder %s16, 3
      %p182 = pnand %p180, %p181
      %p183 = pneg %p182
      // Predicated region
      $region29: #{tpu_custom_call.1} parent=5 // pred_check
        _
      $region30: #{tpu_custom_call.1} parent=5 // pred_check_branch
        %185 = sbr.rel (%p182) target = $region32
      $region31: #{tpu_custom_call.1} parent=5 // pred_region
        %s186 = ssub.s32 %s16, 1
        %s187 = sand.u32 %s43, 1
        %s188 = scalar_lea.sflag [#allocation4], %s187
        %s189 = sand.u32 %s43, 1
        %s190 = smul.addr %s189, 2
        %s191 = scalar_lea.vmem [#allocation3], %s190
        // Predicated region
        $region33: #{tpu_custom_call.1} parent=31 // pred_check
          %p192 = pneg %p56
        $region34: #{tpu_custom_call.1} parent=31 // pred_check_branch
          %194 = sbr.rel (%p192) target = $region36
        $region35: #{tpu_custom_call.1} parent=31 // pred_region
          %196 = dma.done %s188, 32
        $region36: #{tpu_custom_call.1} parent=31 // pred_fallthru
          _
        %s197 = sand.u32 %s43, 1
        %s198 = scalar_lea.sflag [#allocation4], %s197
        %s199 = sand.u32 %s43, 1
        %s200 = smul.addr %s199, 2
        %s201 = scalar_lea.vmem [#allocation3], %s200
        %p202 = pneg %p56
        %p203 = pneg %p53
        %p204 = scmp.lt.s32.totalorder %s25, 0
        %s205 = scalar_select %p204, %s25, 0
        %s206 = smul.addr %s205, 2
        %s207 = scalar_lea.vmem %s1, %s206
        %p208 = pneg %p82
        %p209 = pneg %p79
        %p210 = pneg %p103
        %p211 = pneg %p100
        %p212 = pneg %p131
        %p213 = pneg %p128
        %s214 = sand.u32 %s118, 1
        %s215 = scalar_lea.sflag [#allocation5], %s214
        %s216 = sand.u32 %s118, 1
        %s217 = smul.addr %s216, 2
        %s218 = scalar_lea.vmem [#allocation6], %s217
        %p219 = scmp.lt.s32.totalorder %s25, 0
        %s220 = scalar_select %p219, %s25, 0
        %s221 = smul.addr %s220, 2
        %s222 = scalar_lea.vmem %s1, %s221
        %v223 = vld [vmem:[%s191] sm:$0x3]
        %v224 = vld [vmem:[%s222] sm:$0x3]
        %v225 = vadd.f32 %v223, %v224
        %226 = vst [vmem:[%s218] sm:$0x3] %v225
        %s227 = sand.u32 %s118, 1
        %s228 = scalar_lea.sflag [#allocation5], %s227
        %s229 = sand.u32 %s118, 1
        %s230 = smul.addr %s229, 2
        %s231 = scalar_lea.vmem [#allocation6], %s230
        // Predicated region
        $region37: #{tpu_custom_call.1} parent=31 // pred_check
          %p232 = pneg %p128
        $region38: #{tpu_custom_call.1} parent=31 // pred_check_branch
          %234 = sbr.rel (%p232) target = $region40
        $region39: #{tpu_custom_call.1} parent=31 // pred_region
          %236 = vsyncadd %s228, 0
          %s237 = sadd.s32 %s25, %s26
          %s238 = smul.addr %s237, 2
          %s239 = scalar_lea.hbm %s3, %s238
          %s241 = sshll.u32 %s231, 4
          %s242 = int_to_ptr.vmem [resolvable:$true] %s241
          %s243 = sshll.u32 %s239, 4
          %s244 = int_to_ptr.hbm [resolvable:$true] %s243
          %246 = dma.vmem_to_hbm [thread:$0]  %s242, 32, %s244, %s228
        $region40: #{tpu_custom_call.1} parent=31 // pred_fallthru
          _
      $region32: #{tpu_custom_call.1} parent=5 // pred_fallthru
        _
      %p247 = scmp.le.s32.totalorder 2, %s16
      // Predicated region
      $region41: #{tpu_custom_call.1} parent=5 // pred_check
        %p248 = pneg %p247
      $region42: #{tpu_custom_call.1} parent=5 // pred_check_branch
        %250 = sbr.rel (%p248) target = $region44
      $region43: #{tpu_custom_call.1} parent=5 // pred_region
        %s251 = ssub.s32 %s16, 2
        // Predicated region
        $region45: #{tpu_custom_call.1} parent=43 // pred_check
          %p252 = pneg %p134
        $region46: #{tpu_custom_call.1} parent=43 // pred_check_branch
          %254 = sbr.rel (%p252) target = $region48
        $region47: #{tpu_custom_call.1} parent=43 // pred_region
          %s255 = sand.u32 %s119, 1
          %s256 = scalar_lea.sflag [#allocation5], %s255
          %s257 = sand.u32 %s119, 1
          %s258 = smul.addr %s257, 2
          %s259 = scalar_lea.vmem [#allocation6], %s258
          %261 = dma.done %s256, 32
        $region48: #{tpu_custom_call.1} parent=43 // pred_fallthru
          _
      $region44: #{tpu_custom_call.1} parent=5 // pred_fallthru
        _
    $region6: #{tpu_custom_call.1} parent=1 // loop_footer
      %s20 = sadd.s32 1, %s16
    $region7: #{tpu_custom_call.1} parent=1 // loop_footer_branch
      %15 = sbr.rel target = $region3
    $region8: #{tpu_custom_call.1} parent=1 // loop_exit
      _
    %262 = vsyncpa [#allocation4], 1
    %s263 = scalar_lea.sflag [#allocation4], 1
    %264 = vsyncpa %s263, 1
    %265 = vsyncpa [#allocation5], 1
    %s266 = scalar_lea.sflag [#allocation5], 1
    %267 = vsyncpa %s266, 1

</llo_original>
